<compile_context>
chip_gen: v6e
topology: v6e:2x2x1
jax: 0.10.0
libtpu: 0.0.40
codegen_flags: <defaults>
</compile_context>

<pallas_src>
import functools

import jax
import jax.numpy as jnp
from jax.experimental import pallas as pl
from jax.experimental.pallas import tpu as pltpu


def _round_up(x, m):
    return ((x + m - 1) // m) * m


def _position_set_loss_kernel(p1_ref, p2t_ref, out_ref, acc_ref, *,
                              n_total, tile_n, tile_m):
    # p1_ref : (TILE_N, 2)     -- set-1 positions (rows = points)
    # p2t_ref: (2, TILE_M)     -- set-2 positions, transposed (x row, y row)
    # out_ref: (1, 128)        -- lane-dense per-N-tile partial sum
    # acc_ref: (TILE_N, 128)   -- running min of squared distances
    i = pl.program_id(0)
    m_step = pl.program_id(1)

    @pl.when(m_step == 0)
    def _():
        acc_ref[...] = jnp.full(acc_ref.shape, jnp.inf, dtype=acc_ref.dtype)

    x1 = p1_ref[:, 0:1]          # (TILE_N, 1)
    y1 = p1_ref[:, 1:2]          # (TILE_N, 1)
    x2 = p2t_ref[0:1, :]         # (1, TILE_M)
    y2 = p2t_ref[1:2, :]         # (1, TILE_M)

    dx = x1 - x2                 # (TILE_N, TILE_M) via broadcast
    dy = y1 - y2
    d2 = dx * dx + dy * dy       # squared pairwise distances (no sqrt here)

    # Fold the TILE_M lanes into the 128-lane accumulator with element-wise
    # (VPU) minimums; lane-aligned static slices are free vreg selections.
    running = acc_ref[...]
    for c in range(tile_m // 128):
        running = jnp.minimum(running, d2[:, c * 128:(c + 1) * 128])
    acc_ref[...] = running

    @pl.when(m_step == pl.num_programs(1) - 1)
    def _():
        # One XLU lane-reduce + TILE_N sqrts per N tile.
        min_sq = jnp.min(acc_ref[...], axis=1, keepdims=True)   # (TILE_N, 1)
        dist = jnp.sqrt(min_sq)                                   # (TILE_N, 1)
        rows = jax.lax.broadcasted_iota(jnp.int32, (tile_n, 1), 0) + i * tile_n
        dist = jnp.where(rows < n_total, dist, 0.0)               # mask pad rows
        s = jnp.sum(dist, axis=0, keepdims=True)                  # (1, 1)
        out_ref[...] = jnp.broadcast_to(s, (1, 128))              # lane-dense


def position_set_loss(pos1, pos2, *, tile_n=256, tile_m=1024):
    """pos1: (N, 2), pos2: (M, 2) -> scalar float32 loss."""
    pos1 = jnp.asarray(pos1, jnp.float32)
    pos2 = jnp.asarray(pos2, jnp.float32)
    n = pos1.shape[0]
    m = pos2.shape[0]

    # Tile sizes: sublane multiple for N, lane multiple for M; shrink for
    # small inputs so we do not pad out to a full default tile.
    tn = min(tile_n, _round_up(n, 8))
    tm = min(tile_m, _round_up(m, 128))
    n_pad = _round_up(n, tn)
    m_pad = _round_up(m, tm)

    p1 = jnp.pad(pos1, ((0, n_pad - n), (0, 0)))                    # zeros, masked in-kernel
    p2 = jnp.pad(pos2, ((0, m_pad - m), (0, 0)), constant_values=1e18)  # huge -> never the min
    p2t = p2.T                                                      # (2, M_pad)

    num_n = n_pad // tn
    num_m = m_pad // tm

    kernel = functools.partial(_position_set_loss_kernel,
                               n_total=n, tile_n=tn, tile_m=tm)

    partial_sums = pl.pallas_call(
        kernel,
        out_shape=jax.ShapeDtypeStruct((num_n, 128), jnp.float32),
        grid_spec=pltpu.PrefetchScalarGridSpec(
            num_scalar_prefetch=0,
            grid=(num_n, num_m),
            in_specs=[
                pl.BlockSpec((tn, 2), lambda i, k: (i, 0)),
                pl.BlockSpec((2, tm), lambda i, k: (0, k)),
            ],
            out_specs=pl.BlockSpec((1, 128), lambda i, k: (i, 0)),
            scratch_shapes=[pltpu.VMEM((tn, 128), jnp.float32)],
        ),
        compiler_params=pltpu.CompilerParams(
            dimension_semantics=("parallel", "arbitrary")),
    )(p1, p2t)

    # Tiny final mean in plain JAX (true N, not the padded tile size).
    return jnp.sum(partial_sums[:, 0]) / n


def _reference(pos1, pos2):
    # Pure-JAX reference mirroring the PyTorch forward.
    d = pos1[:, None, :] - pos2[None, :, :]
    dist = jnp.sqrt(jnp.sum(d * d, axis=2))
    return jnp.mean(jnp.min(dist, axis=1))


if __name__ == "__main__":
    key = jax.random.PRNGKey(0)
    k1, k2 = jax.random.split(key)

    # Small shapes consistent with the module (two sets of 2-D positions).
    N, M = 8, 8
    pos1 = jax.random.uniform(k1, (N, 2), dtype=jnp.float32) * 16.0
    pos2 = jax.random.uniform(k2, (M, 2), dtype=jnp.float32) * 16.0

    loss = jax.block_until_ready(position_set_loss(pos1, pos2))
    ref = _reference(pos1, pos2)
    assert jnp.allclose(loss, ref, rtol=1e-5, atol=1e-5), (loss, ref)

    # Non-multiple sizes exercise the padding / masking path.
    k3, k4 = jax.random.split(k2)
    pos1b = jax.random.uniform(k3, (10, 2), dtype=jnp.float32) * 16.0
    pos2b = jax.random.uniform(k4, (200, 2), dtype=jnp.float32) * 16.0
    loss_b = jax.block_until_ready(position_set_loss(pos1b, pos2b))
    ref_b = _reference(pos1b, pos2b)
    assert jnp.allclose(loss_b, ref_b, rtol=1e-5, atol=1e-5), (loss_b, ref_b)

    print("KERNEL_OK")
</pallas_src>

<mosaic_0001>
module attributes {stable_mosaic.version = 11 : i64} {
  func.func @_position_set_loss_kernel(%arg0: i32, %arg1: i32, %arg2: memref<8x2xf32, #tpu.memory_space<vmem>>, %arg3: memref<2x128xf32, #tpu.memory_space<vmem>>, %arg4: memref<1x128xf32, #tpu.memory_space<vmem>>, %arg5: memref<8x128xf32, #tpu.memory_space<vmem>>) attributes {dimension_semantics = [#tpu.dimension_semantics<parallel>, #tpu.dimension_semantics<arbitrary>], iteration_bounds = array<i64: 1, 1>, scalar_prefetch = 0 : i64, scratch_operands = 1 : i64, tpu.core_type = #tpu.core_type<tc>, window_params = [{transform_indices = @transform_0, window_bounds = array<i64: 8, 2>}, {transform_indices = @transform_1, window_bounds = array<i64: 2, 128>}, {transform_indices = @transform_2, window_bounds = array<i64: 1, 128>}]} {
    %c0_i32 = arith.constant 0 : i32
    %0 = arith.cmpi eq, %arg1, %c0_i32 : i32
    %1 = arith.extui %0 : i1 to i32
    %c0_i32_0 = arith.constant 0 : i32
    %2 = arith.cmpi ne, %1, %c0_i32_0 : i32
    scf.if %2 {
      %cst = arith.constant 0x7F800000 : f32
      %22 = vector.broadcast %cst : f32 to vector<8x128xf32>
      %c0_13 = arith.constant 0 : index
      %c0_14 = arith.constant 0 : index
      %23 = vector.load %arg5[%c0_13, %c0_14] : memref<8x128xf32, #tpu.memory_space<vmem>>, vector<8x128xf32>
      tpu.vector_store %arg5[%c0_13, %c0_14], %22 {strides = array<i32>} : memref<8x128xf32, #tpu.memory_space<vmem>>, vector<8x128xf32>,
    } else {
    }
    %c0 = arith.constant 0 : index
    %c0_1 = arith.constant 0 : index
    %3 = vector.load %arg2[%c0, %c0_1] : memref<8x2xf32, #tpu.memory_space<vmem>>, vector<8x1xf32>
    %c0_2 = arith.constant 0 : index
    %c1 = arith.constant 1 : index
    %4 = vector.load %arg2[%c0_2, %c1] : memref<8x2xf32, #tpu.memory_space<vmem>>, vector<8x1xf32>
    %c0_3 = arith.constant 0 : index
    %c0_4 = arith.constant 0 : index
    %5 = vector.load %arg3[%c0_3, %c0_4] : memref<2x128xf32, #tpu.memory_space<vmem>>, vector<1x128xf32>
    %c1_5 = arith.constant 1 : index
    %c0_6 = arith.constant 0 : index
    %6 = vector.load %arg3[%c1_5, %c0_6] : memref<2x128xf32, #tpu.memory_space<vmem>>, vector<1x128xf32>
    %7 = vector.broadcast %3 : vector<8x1xf32> to vector<8x128xf32>
    %8 = vector.broadcast %5 : vector<1x128xf32> to vector<8x128xf32>
    %9 = arith.subf %7, %8 : vector<8x128xf32>
    %10 = vector.broadcast %4 : vector<8x1xf32> to vector<8x128xf32>
    %11 = vector.broadcast %6 : vector<1x128xf32> to vector<8x128xf32>
    %12 = arith.subf %10, %11 : vector<8x128xf32>
    %13 = arith.mulf %9, %9 : vector<8x128xf32>
    %14 = arith.mulf %12, %12 : vector<8x128xf32>
    %15 = arith.addf %13, %14 : vector<8x128xf32>
    %c0_7 = arith.constant 0 : index
    %c0_8 = arith.constant 0 : index
    %16 = vector.load %arg5[%c0_7, %c0_8] : memref<8x128xf32, #tpu.memory_space<vmem>>, vector<8x128xf32>
    %17 = arith.minimumf %16, %15 : vector<8x128xf32>
    %c0_9 = arith.constant 0 : index
    %c0_10 = arith.constant 0 : index
    %18 = vector.load %arg5[%c0_9, %c0_10] : memref<8x128xf32, #tpu.memory_space<vmem>>, vector<8x128xf32>
    tpu.vector_store %arg5[%c0_9, %c0_10], %17 {strides = array<i32>} : memref<8x128xf32, #tpu.memory_space<vmem>>, vector<8x128xf32>,
    %c0_i32_11 = arith.constant 0 : i32
    %19 = arith.cmpi eq, %arg1, %c0_i32_11 : i32
    %20 = arith.extui %19 : i1 to i32
    %c0_i32_12 = arith.constant 0 : i32
    %21 = arith.cmpi ne, %20, %c0_i32_12 : i32
    scf.if %21 {
      %c0_13 = arith.constant 0 : index
      %c0_14 = arith.constant 0 : index
      %22 = vector.load %arg5[%c0_13, %c0_14] : memref<8x128xf32, #tpu.memory_space<vmem>>, vector<8x128xf32>
      %cst = arith.constant dense<0x7F800000> : vector<8xf32>
      %23 = vector.multi_reduction <minimumf>, %22, %cst [1] : vector<8x128xf32> to vector<8xf32>
      %24 = vector.shape_cast %23 : vector<8xf32> to vector<8x1xf32>
      %25 = math.sqrt %24 : vector<8x1xf32>
      %26 = tpu.iota {dimensions = array<i32: 0>} : vector<8x1xi32>
      %c8_i32 = arith.constant 8 : i32
      %27 = arith.muli %arg0, %c8_i32 : i32
      %28 = vector.broadcast %27 : i32 to vector<8x1xi32>
      %29 = arith.addi %26, %28 : vector<8x1xi32>
      %c8_i32_15 = arith.constant 8 : i32
      %30 = vector.broadcast %c8_i32_15 : i32 to vector<8x1xi32>
      %31 = arith.cmpi slt, %29, %30 : vector<8x1xi32>
      %cst_16 = arith.constant 0.000000e+00 : f32
      %32 = vector.broadcast %cst_16 : f32 to vector<8x1xf32>
      %33 = arith.select %31, %25, %32 : vector<8x1xi1>, vector<8x1xf32>
      %cst_17 = arith.constant dense<0.000000e+00> : vector<1xf32>
      %34 = vector.multi_reduction <add>, %33, %cst_17 [0] : vector<8x1xf32> to vector<1xf32>
      %35 = vector.shape_cast %34 : vector<1xf32> to vector<1x1xf32>
      %36 = vector.shape_cast %35 : vector<1x1xf32> to vector<1x1xf32>
      %37 = vector.broadcast %36 : vector<1x1xf32> to vector<1x128xf32>
      %c0_18 = arith.constant 0 : index
      %c0_19 = arith.constant 0 : index
      %38 = vector.load %arg4[%c0_18, %c0_19] : memref<1x128xf32, #tpu.memory_space<vmem>>, vector<1x128xf32>
      tpu.vector_store %arg4[%c0_18, %c0_19], %37 {strides = array<i32>} : memref<1x128xf32, #tpu.memory_space<vmem>>, vector<1x128xf32>,
    } else {
    }
    return
  }
  func.func @transform_0(%arg0: i32, %arg1: i32) -> (i32, i32) {
    %c0_i32 = arith.constant 0 : i32
    %c0_i32_0 = arith.constant 0 : i32
    return %arg0, %c0_i32 : i32, i32
  }
  func.func @transform_1(%arg0: i32, %arg1: i32) -> (i32, i32) {
    %c0_i32 = arith.constant 0 : i32
    %c0_i32_0 = arith.constant 0 : i32
    return %c0_i32, %arg1 : i32, i32
  }
  func.func @transform_2(%arg0: i32, %arg1: i32) -> (i32, i32) {
    %c0_i32 = arith.constant 0 : i32
    %c0_i32_0 = arith.constant 0 : i32
    return %arg0, %c0_i32 : i32, i32
  }
}

</mosaic_0001>

<llo_original>
// kernel: tpu_custom_call.1
$region0: #{tpu_custom_call.1}
  #allocation0 [shape = 'u32[]', space=smem, size = 0x4, offset = 0x4, fixed_abs, tag = 'smem constant byte address 0x4 - core index']
  #allocation1 [shape = 'u32[144,128]{1,0:T(1,128)}', space=vmem, size = 0x12000, scoped, tag = 'internal scratch']
  #allocation2 [shape = 'f32[8,128]{1,0:T(8,128)}', space=vmem, size = 0x1000, scoped, tag = 'scratch operand']
  %s0 = inlined_call_operand.vmem [shape: f32[8,2], index: 0, kind: input, shape index: {}]
  %s1 = inlined_call_operand.vmem [shape: f32[2,128], index: 1, kind: input, shape index: {}]
  %s2 = inlined_call_operand.hbm [shape: f32[1,128], index: 2, kind: output, shape index: {}]
  %s3 = sld [smem:[#allocation0]]
  $region26: #{tpu_custom_call.1} parent=0
    _
  %s5 = ssub.s32 1, %s3
  %s6 = scalar_select 0, %s5, %s3
  $region1: #{tpu_custom_call.1} parent=0
    #allocation3 [shape = 'u8[512]{0}', space=vmem, size = 0x400, scoped, tag = 'output window, operand 0, single buffered']
    #allocation4 [shape = 's32[1]{0}', space=sflag, size = 0x4, scoped, tag = 'scoped memory for tpu_custom_call.1']
    %7 = vsyncpa [#allocation4], 0
    // Predicated region
    $region2: #{tpu_custom_call.1} parent=1 // pred_check
      _
    $region3: #{tpu_custom_call.1} parent=1 // pred_check_branch
      %9 = sbr.rel (0) target = $region5
    $region4: #{tpu_custom_call.1} parent=1 // pred_region
      _
    $region5: #{tpu_custom_call.1} parent=1 // pred_fallthru
      _
    // Predicated region
    $region6: #{tpu_custom_call.1} parent=1 // pred_check
      _
    $region7: #{tpu_custom_call.1} parent=1 // pred_check_branch
      %11 = sbr.rel (0) target = $region9
    $region8: #{tpu_custom_call.1} parent=1 // pred_region
      _
    $region9: #{tpu_custom_call.1} parent=1 // pred_fallthru
      _
    %p12 = scmp.eq.s32.totalorder 0, 0
    // Predicated region
    $region10: #{tpu_custom_call.1} parent=1 // pred_check
      %p13 = pneg %p12
    $region11: #{tpu_custom_call.1} parent=1 // pred_check_branch
      %15 = sbr.rel (%p13) target = $region13
    $region12: #{tpu_custom_call.1} parent=1 // pred_region
      %16 = vst [vmem:[#allocation2] sm:$0xff] inf
    $region13: #{tpu_custom_call.1} parent=1 // pred_fallthru
      _
    %v17 = vld [vmem:[%s0] sm:$0xff]
    %v18 = vld [vmem:[%s1] sm:$0x1]
    %v19 = vld [vmem:[%s1 + $0x1] sm:$0x1]
    %21 = vset.pattern.permute.xlu0 0
    %22 = vperm.xlu0 %21, %v17
    %v23 = vpop.permute.xlu0 %22
    %v25 = vlaneseq
    %v26 = vshrl.u32 %v25, 7
    %v27 = vsub.s32 0, %v26
    %v28 = vrot.slane %v18, %v27
    %v29 = vsub.f32 %v23, %v28
    %30 = vset.pattern.permute.xlu0 1
    %31 = vperm.xlu0 %30, %v17
    %v32 = vpop.permute.xlu0 %31
    %v34 = vlaneseq
    %v35 = vshrl.u32 %v34, 7
    %v36 = vsub.s32 0, %v35
    %v37 = vrot.slane %v19, %v36
    %v38 = vsub.f32 %v32, %v37
    %v39 = vmul.f32 %v29, %v29
    %v40 = vmul.f32 %v38, %v38
    %v41 = vadd.f32 %v39, %v40
    %v42 = vld [vmem:[#allocation2] sm:$0xff]
    %v43 = vmin.f32 %v42, %v41
    %44 = vst [vmem:[#allocation2] sm:$0xff] %v43
    // Predicated region
    $region14: #{tpu_custom_call.1} parent=1 // pred_check
      %p45 = pneg %p12
    $region15: #{tpu_custom_call.1} parent=1 // pred_check_branch
      %47 = sbr.rel (%p45) target = $region17
    $region16: #{tpu_custom_call.1} parent=1 // pred_region
      %v48 = vld [vmem:[#allocation2] sm:$0xff]
      %49 = vmin.xlane.f32.xlu0 %v48
      %v50 = vpop.xlane.xlu0 %49
      %v51 = vrsqrt.pop %v50
      %v52 = vmul.f32 %v50, %v51
      %vm53 = vcmp.eq.f32.partialorder %v50, inf
      %v54 = vsel %vm53, %v50, %v52
      %vm55 = vcmp.eq.f32.partialorder %v50, 0.0
      %v56 = vand.u32 %v50, 2147483648
      %v57 = vsel %vm55, %v56, %v54
      %v58 = vlaneseq
      %v59 = vshrl.u32 %v58, 7
      %s60 = smul.u32 0, 8
      %v61 = vstv %s60
      %v62 = vadd.s32 %v59, %v61
      %vm63 = vcmp.lt.s32.totalorder %v62, 8
      %v64 = vsel %vm63, %v57, 0.0
      %v65 = vrot.slane %v64, 4
      %v66 = vadd.f32 %v64, %v65
      %v67 = vrot.slane %v66, 2
      %v68 = vadd.f32 %v66, %v67
      %v69 = vrot.slane %v68, 1
      %v70 = vadd.f32 %v68, %v69
      %71 = vst [vmem:[#allocation3] sm:$0x1] %v70
    $region17: #{tpu_custom_call.1} parent=1 // pred_fallthru
      _
    // Predicated region
    $region18: #{tpu_custom_call.1} parent=1 // pred_check
      _
    $region19: #{tpu_custom_call.1} parent=1 // pred_check_branch
      %73 = sbr.rel (0) target = $region21
    $region20: #{tpu_custom_call.1} parent=1 // pred_region
      %s75 = ssub.s32 16, 16
      %76 = vsyncadd [#allocation4], %s75
      %s78 = sshll.u32 [#allocation3], 4
      %s79 = int_to_ptr.vmem [resolvable:$true] %s78
      %81 = dma.vmem_to_hbm [thread:$0]  %s79, 16, %s2, [#allocation4]
    $region21: #{tpu_custom_call.1} parent=1 // pred_fallthru
      _
    // Predicated region
    $region22: #{tpu_custom_call.1} parent=1 // pred_check
      _
    $region23: #{tpu_custom_call.1} parent=1 // pred_check_branch
      %83 = sbr.rel (0) target = $region25
    $region24: #{tpu_custom_call.1} parent=1 // pred_region
      %84 = dma.done [#allocation4], 16
    $region25: #{tpu_custom_call.1} parent=1 // pred_fallthru
      _
    %85 = vsyncpa [#allocation4], 1

</llo_original>
